<compile_context>
chip_gen: v7x
topology: tpu7x:2x2x1
jax: 0.10.0
libtpu: 0.0.40
codegen_flags: <defaults>
</compile_context>

<pallas_src>
import jax
import jax.numpy as jnp
import numpy as np
from jax.experimental import pallas as pl
from jax.experimental.pallas import tpu as pltpu

BN_EPS = 1e-5
_BF16 = jnp.bfloat16
_VMEM = pl.BlockSpec(memory_space=pltpu.MemorySpace.VMEM)


# ---------------------------------------------------------------------------
# Helpers
# ---------------------------------------------------------------------------
def _vmem_capacity_bytes():
    try:
        return int(pltpu.get_tpu_info().vmem_capacity_bytes)
    except Exception:
        return 64 << 20  # conservative default: v7x per-TensorCore VMEM


def _fused_vmem_estimate(B, Cin, Chid, Cpj, P, HW):
    """Rough upper bound on VMEM bytes for the fully-resident fused path."""
    resident = 4 * B * HW * (Cin + Cpj + P)                 # x, y1 scratch, out (f32)
    per_batch_tmp = HW * (2 * Cin + 6 * Chid + 10 * Cpj + 4 * P)  # f32/bf16 temporaries
    weights = 6 * (Chid * Cin + Cpj * Chid + P * Cpj) + 4 * (Chid + 2 * Cpj + P + 64)
    return resident + per_batch_tmp + weights


def _pad_rows8(a):
    r = (-a.shape[0]) % 8
    if r:
        a = jnp.concatenate([a, jnp.zeros((r, a.shape[1]), a.dtype)], axis=0)
    return a


def _pack_channel_vectors(vecs):
    """Concatenate per-channel [C,1] vectors (each padded to a sublane multiple)."""
    offs, padded, cur = [], [], 0
    for v in vecs:
        offs.append(cur)
        p = _pad_rows8(v)
        padded.append(p)
        cur += p.shape[0]
    return jnp.concatenate(padded, axis=0), tuple(offs)


def _pick_tile(HW):
    for t in (4096, 2048, 1024, 512, 256, 128):
        if HW % t == 0:
            return t
    raise NotImplementedError("H*W must be a multiple of 128 for the tiled path")


# ---------------------------------------------------------------------------
# Fused single-call kernel: everything VMEM-resident, per-batch loop.
#   x      : [B, Cin, HW]
#   w0/w1/w2 : conv1x1 weights in natural [Cout, Cin] layout
#   pvec   : packed per-channel vectors [*, 1] = (b0 | gamma | beta | b2)
#   out    : [B, P, HW]
#   y1_ref : VMEM scratch [B, Cpj, HW] (projector conv1 output, pre-BN)
# ---------------------------------------------------------------------------
def _make_fused_kernel(B, Chid, Cpj, P, HW, offs):
    o_b0, o_g, o_be, o_b2 = offs
    inv_n = 1.0 / float(B * HW)

    def kernel(x_ref, w0_ref, w1_ref, w2_ref, pvec_ref, o_ref, y1_ref):
        w0 = w0_ref[...].astype(_BF16)
        w1 = w1_ref[...].astype(_BF16)
        w2 = w2_ref[...].astype(_BF16)
        b0 = pvec_ref[o_b0:o_b0 + Chid, :]
        gamma = pvec_ref[o_g:o_g + Cpj, :]
        beta = pvec_ref[o_be:o_be + Cpj, :]
        b2 = pvec_ref[o_b2:o_b2 + P, :]

        # Pass A: representation = relu(conv0(x)); projector conv1 (no b1: a
        # per-channel bias cancels under train-mode BN).  Accumulate channel sums.
        total = jnp.zeros((Cpj, 1), jnp.float32)
        for b in range(B):
            x_b = x_ref[b].astype(_BF16)                                   # [Cin, HW]
            rep = jnp.maximum(
                jnp.dot(w0, x_b, preferred_element_type=jnp.float32) + b0, 0.0)
            y1 = jnp.dot(w1, rep.astype(_BF16),
                         preferred_element_type=jnp.float32)               # [Cpj, HW]
            y1_ref[b] = y1
            total = total + jnp.sum(y1, axis=-1, keepdims=True)
        mean = total * inv_n                                               # [Cpj, 1]

        # Pass B: two-pass (centered) variance streamed over resident y1.
        ssq = jnp.zeros((Cpj, 1), jnp.float32)
        for b in range(B):
            c = y1_ref[b] - mean
            ssq = ssq + jnp.sum(c * c, axis=-1, keepdims=True)
        inv_std = jax.lax.rsqrt(ssq * inv_n + BN_EPS)
        s = inv_std * gamma                                                # fold BN
        t = beta - mean * s

        # Pass C: BN (single scale+shift) + ReLU + projector conv2, per batch.
        for b in range(B):
            yr = jnp.maximum(y1_ref[b] * s + t, 0.0)
            o_ref[b] = jnp.dot(w2, yr.astype(_BF16),
                               preferred_element_type=jnp.float32) + b2

    return kernel


def _forward_fused(x3, params, vmem_cap, est):
    B, Cin, HW = x3.shape
    Chid = params["w0"].shape[0]
    Cpj = params["w1"].shape[0]
    P = params["w2"].shape[0]

    pvec, offs = _pack_channel_vectors(
        [params["b0"], params["gamma"], params["beta"], params["b2"]])

    mm_flops = 2 * B * HW * (Cin * Chid + Chid * Cpj + Cpj * P)
    ew_flops = B * HW * (2 * Chid + 6 * Cpj + P)
    bytes_io = 4 * (x3.size + B * P * HW + Chid * Cin + Cpj * Chid + P * Cpj
                    + int(pvec.shape[0]))
    cost = pl.CostEstimate(flops=int(mm_flops + ew_flops),
                           transcendentals=int(Cpj),
                           bytes_accessed=int(bytes_io))

    vmem_limit = int(min(int(0.9 * vmem_cap), max(2 * est + (4 << 20), 32 << 20)))

    return pl.pallas_call(
        _make_fused_kernel(B, Chid, Cpj, P, HW, offs),
        out_shape=jax.ShapeDtypeStruct((B, P, HW), jnp.float32),
        in_specs=[_VMEM] * 5,
        out_specs=_VMEM,
        scratch_shapes=[pltpu.VMEM((B, Cpj, HW), jnp.float32)],
        compiler_params=pltpu.CompilerParams(vmem_limit_bytes=vmem_limit),
        cost_estimate=cost,
    )(x3, params["w0"], params["w1"], params["w2"], pvec)


# ---------------------------------------------------------------------------
# Tiled fallback for activations exceeding the resident VMEM budget.
# Pass 1: accumulate per-channel sum / sum-of-squares of projector conv1 output.
# Pass 2: recompute conv0/conv1, apply folded BN + ReLU, projector conv2.
# ---------------------------------------------------------------------------
def _stats_kernel(x_ref, w0_ref, b0_ref, w1_ref, sum_ref, ssq_ref):
    @pl.when((pl.program_id(0) == 0) & (pl.program_id(1) == 0))
    def _():
        sum_ref[...] = jnp.zeros_like(sum_ref)
        ssq_ref[...] = jnp.zeros_like(ssq_ref)

    x = x_ref[0].astype(_BF16)                                             # [Cin, T]
    rep = jnp.maximum(
        jnp.dot(w0_ref[...].astype(_BF16), x,
                preferred_element_type=jnp.float32) + b0_ref[...], 0.0)
    y1 = jnp.dot(w1_ref[...].astype(_BF16), rep.astype(_BF16),
                 preferred_element_type=jnp.float32)                       # [Cpj, T]
    sum_ref[...] += jnp.sum(y1, axis=-1, keepdims=True)
    ssq_ref[...] += jnp.sum(y1 * y1, axis=-1, keepdims=True)


def _apply_kernel(x_ref, w0_ref, b0_ref, w1_ref, s_ref, t_ref, w2_ref, b2_ref, o_ref):
    x = x_ref[0].astype(_BF16)
    rep = jnp.maximum(
        jnp.dot(w0_ref[...].astype(_BF16), x,
                preferred_element_type=jnp.float32) + b0_ref[...], 0.0)
    y1 = jnp.dot(w1_ref[...].astype(_BF16), rep.astype(_BF16),
                 preferred_element_type=jnp.float32)
    yr = jnp.maximum(y1 * s_ref[...] + t_ref[...], 0.0)
    o_ref[0] = jnp.dot(w2_ref[...].astype(_BF16), yr.astype(_BF16),
                       preferred_element_type=jnp.float32) + b2_ref[...]


def _forward_tiled(x3, params):
    B, Cin, HW = x3.shape
    Chid = params["w0"].shape[0]
    Cpj = params["w1"].shape[0]
    P = params["w2"].shape[0]
    TILE = _pick_tile(HW)
    grid = (B, HW // TILE)

    def full(shape):
        return pl.BlockSpec(shape, lambda b, t: (0, 0))

    x_spec = pl.BlockSpec((1, Cin, TILE), lambda b, t: (b, 0, t))

    sum_, ssq = pl.pallas_call(
        _stats_kernel,
        grid=grid,
        out_shape=(jax.ShapeDtypeStruct((Cpj, 1), jnp.float32),
                   jax.ShapeDtypeStruct((Cpj, 1), jnp.float32)),
        in_specs=[x_spec, full((Chid, Cin)), full((Chid, 1)), full((Cpj, Chid))],
        out_specs=(full((Cpj, 1)), full((Cpj, 1))),
        compiler_params=pltpu.CompilerParams(
            dimension_semantics=("arbitrary", "arbitrary")),
    )(x3, params["w0"], params["b0"], params["w1"])

    n = float(B * HW)
    mean = sum_ / n
    var = jnp.maximum(ssq / n - mean * mean, 0.0)
    s = jax.lax.rsqrt(var + BN_EPS) * params["gamma"]
    t = params["beta"] - mean * s

    return pl.pallas_call(
        _apply_kernel,
        grid=grid,
        out_shape=jax.ShapeDtypeStruct((B, P, HW), jnp.float32),
        in_specs=[x_spec,
                  full((Chid, Cin)), full((Chid, 1)), full((Cpj, Chid)),
                  full((Cpj, 1)), full((Cpj, 1)),
                  full((P, Cpj)), full((P, 1))],
        out_specs=pl.BlockSpec((1, P, TILE), lambda b, t: (b, 0, t)),
        compiler_params=pltpu.CompilerParams(
            dimension_semantics=("parallel", "parallel")),
    )(x3, params["w0"], params["b0"], params["w1"], s, t,
      params["w2"], params["b2"])


# ---------------------------------------------------------------------------
# Public wrapper
# ---------------------------------------------------------------------------
def net_wrapper_forward(x_nchw, params, *, force_tiled=False):
    """NetWrapper.forward: x [B, Cin, H, W] f32 -> projection [B, proj_size, H, W]."""
    B, Cin, H, W = x_nchw.shape
    HW = H * W
    # TODO(synk): pad H*W to a multiple of 128 and mask the padded lanes out of
    # the BN statistics to support arbitrary spatial sizes; currently guarded so
    # all stores stay unmasked full-vreg vst.
    assert HW % 128 == 0, f"H*W={HW} must be a multiple of 128"

    Chid = params["w0"].shape[0]
    Cpj = params["w1"].shape[0]
    P = params["w2"].shape[0]

    # NCHW -> [B, Cin, H*W]: contiguous reshape (free); the kernel handles the
    # per-batch layout internally and emits [B, P, H*W], so no HBM transposes.
    x3 = x_nchw.reshape(B, Cin, HW)

    vmem_cap = _vmem_capacity_bytes()
    est = _fused_vmem_estimate(B, Cin, Chid, Cpj, P, HW)
    if force_tiled or est > 0.45 * vmem_cap:
        out3 = _forward_tiled(x3, params)
    else:
        out3 = _forward_fused(x3, params, vmem_cap, est)
    return out3.reshape(B, P, H, W)


# ---------------------------------------------------------------------------
# Pure-JAX reference (mirrors the PyTorch module; keeps b1, train-mode BN).
# ---------------------------------------------------------------------------
def reference_forward(x_nchw, params, matmul_dtype=jnp.float32):
    B, Cin, H, W = x_nchw.shape

    def mm(a, b):
        return jnp.dot(a.astype(matmul_dtype), b.astype(matmul_dtype),
                       preferred_element_type=jnp.float32)

    x = jnp.transpose(x_nchw, (0, 2, 3, 1)).reshape(-1, Cin)               # [N, Cin]
    rep = jnp.maximum(mm(x, params["w0"].T) + params["b0"].T, 0.0)
    y = mm(rep, params["w1"].T) + params["b1"].T
    mean = jnp.mean(y, axis=0, keepdims=True)
    var = jnp.mean((y - mean) ** 2, axis=0, keepdims=True)
    yn = (y - mean) / jnp.sqrt(var + BN_EPS) * params["gamma"].T + params["beta"].T
    out = mm(jnp.maximum(yn, 0.0), params["w2"].T) + params["b2"].T
    return jnp.transpose(out.reshape(B, H, W, -1), (0, 3, 1, 2))


# ---------------------------------------------------------------------------
if __name__ == "__main__":
    # Small shapes consistent with the module.
    B, Cin, H, W = 2, 4, 16, 16
    C_hidden = 32            # backbone hidden (representation) channels
    proj_hidden = 64         # projection_hidden_size (MLP inner_dim)
    proj_size = 16           # projection_size (MLP chan_out)

    key = jax.random.PRNGKey(0)
    ks = jax.random.split(key, 8)
    params = {
        # backbone conv1x1 (children[0]); children[1]=ReLU is the hooked layer
        "w0": jax.random.normal(ks[0], (C_hidden, Cin), jnp.float32) * 0.3,
        "b0": jax.random.normal(ks[1], (C_hidden, 1), jnp.float32) * 0.1,
        # projector MLP: Conv2d(C_hidden, proj_hidden, 1)
        "w1": jax.random.normal(ks[2], (proj_hidden, C_hidden), jnp.float32) * 0.2,
        "b1": jax.random.normal(ks[3], (proj_hidden, 1), jnp.float32) * 0.1,
        # BatchNorm2d(proj_hidden): fresh module defaults
        "gamma": jnp.ones((proj_hidden, 1), jnp.float32),
        "beta": jnp.zeros((proj_hidden, 1), jnp.float32),
        # Conv2d(proj_hidden, proj_size, 1)
        "w2": jax.random.normal(ks[4], (proj_size, proj_hidden), jnp.float32) * 0.2,
        "b2": jax.random.normal(ks[5], (proj_size, 1), jnp.float32) * 0.1,
    }
    x = jax.random.normal(ks[6], (B, Cin, H, W), jnp.float32)

    out_fused = jax.block_until_ready(net_wrapper_forward(x, params))
    assert out_fused.shape == (B, proj_size, H, W), out_fused.shape

    out_tiled = jax.block_until_ready(net_wrapper_forward(x, params, force_tiled=True))
    assert out_tiled.shape == (B, proj_size, H, W), out_tiled.shape

    # Compare against a reference that applies the same bf16 matmul casting
    # (kernel drops b1 -> BN cancels it, reference keeps it: match proves it).
    ref = jax.block_until_ready(reference_forward(x, params, matmul_dtype=jnp.bfloat16))
    np.testing.assert_allclose(np.asarray(out_fused), np.asarray(ref),
                               rtol=1e-3, atol=1e-3)
    np.testing.assert_allclose(np.asarray(out_tiled), np.asarray(ref),
                               rtol=1e-3, atol=1e-3)

    print("KERNEL_OK")
</pallas_src>

<mosaic_0001>
module attributes {stable_mosaic.version = 11 : i64} {
  func.func @kernel(%arg0: memref<2x4x256xf32, #tpu.memory_space<vmem>>, %arg1: memref<32x4xf32, #tpu.memory_space<vmem>>, %arg2: memref<64x32xf32, #tpu.memory_space<vmem>>, %arg3: memref<16x64xf32, #tpu.memory_space<vmem>>, %arg4: memref<176x1xf32, #tpu.memory_space<vmem>>, %arg5: memref<2x16x256xf32, #tpu.memory_space<vmem>>, %arg6: memref<2x64x256xf32, #tpu.memory_space<vmem>>) attributes {dimension_semantics = [], scalar_prefetch = 0 : i64, scratch_operands = 1 : i64, tpu.core_type = #tpu.core_type<tc>} {
    %c0 = arith.constant 0 : index
    %c0_0 = arith.constant 0 : index
    %0 = vector.load %arg1[%c0, %c0_0] : memref<32x4xf32, #tpu.memory_space<vmem>>, vector<32x4xf32>
    %1 = arith.truncf %0 : vector<32x4xf32> to vector<32x4xbf16>
    %c0_1 = arith.constant 0 : index
    %c0_2 = arith.constant 0 : index
    %2 = vector.load %arg2[%c0_1, %c0_2] : memref<64x32xf32, #tpu.memory_space<vmem>>, vector<64x32xf32>
    %3 = arith.truncf %2 : vector<64x32xf32> to vector<64x32xbf16>
    %c0_3 = arith.constant 0 : index
    %c0_4 = arith.constant 0 : index
    %4 = vector.load %arg3[%c0_3, %c0_4] : memref<16x64xf32, #tpu.memory_space<vmem>>, vector<16x64xf32>
    %5 = arith.truncf %4 : vector<16x64xf32> to vector<16x64xbf16>
    %c0_5 = arith.constant 0 : index
    %c0_6 = arith.constant 0 : index
    %6 = vector.load %arg4[%c0_5, %c0_6] : memref<176x1xf32, #tpu.memory_space<vmem>>, vector<32x1xf32>
    %c32 = arith.constant 32 : index
    %c0_7 = arith.constant 0 : index
    %7 = vector.load %arg4[%c32, %c0_7] : memref<176x1xf32, #tpu.memory_space<vmem>>, vector<64x1xf32>
    %c96 = arith.constant 96 : index
    %c0_8 = arith.constant 0 : index
    %8 = vector.load %arg4[%c96, %c0_8] : memref<176x1xf32, #tpu.memory_space<vmem>>, vector<64x1xf32>
    %c160 = arith.constant 160 : index
    %c0_9 = arith.constant 0 : index
    %9 = vector.load %arg4[%c160, %c0_9] : memref<176x1xf32, #tpu.memory_space<vmem>>, vector<16x1xf32>
    %cst = arith.constant 0.000000e+00 : f32
    %10 = vector.broadcast %cst : f32 to vector<64x1xf32>
    %c0_10 = arith.constant 0 : index
    %c0_11 = arith.constant 0 : index
    %c0_12 = arith.constant 0 : index
    %11 = vector.load %arg0[%c0_10, %c0_11, %c0_12] : memref<2x4x256xf32, #tpu.memory_space<vmem>>, vector<1x4x256xf32>
    %12 = vector.shape_cast %11 : vector<1x4x256xf32> to vector<4x256xf32>
    %13 = arith.truncf %12 : vector<4x256xf32> to vector<4x256xbf16>
    %cst_13 = arith.constant dense<0.000000e+00> : vector<32x256xf32>
    %14 = tpu.matmul %1, %13, %cst_13 {dimension_numbers = #tpu.dot_dimension_numbers<[1], [0], [0], [1], [0, 0, 1, 1], [], []>} : vector<32x4xbf16>, vector<4x256xbf16>, vector<32x256xf32> -> vector<32x256xf32>
    %15 = vector.broadcast %6 : vector<32x1xf32> to vector<32x256xf32>
    %16 = arith.addf %14, %15 : vector<32x256xf32>
    %cst_14 = arith.constant 0.000000e+00 : f32
    %17 = vector.broadcast %cst_14 : f32 to vector<32x256xf32>
    %18 = arith.maximumf %16, %17 : vector<32x256xf32>
    %19 = arith.truncf %18 : vector<32x256xf32> to vector<32x256xbf16>
    %cst_15 = arith.constant dense<0.000000e+00> : vector<64x256xf32>
    %20 = tpu.matmul %3, %19, %cst_15 {dimension_numbers = #tpu.dot_dimension_numbers<[1], [0], [0], [1], [0, 0, 1, 1], [], []>} : vector<64x32xbf16>, vector<32x256xbf16>, vector<64x256xf32> -> vector<64x256xf32>
    %c0_16 = arith.constant 0 : index
    %c0_17 = arith.constant 0 : index
    %c0_18 = arith.constant 0 : index
    %21 = vector.load %arg6[%c0_16, %c0_17, %c0_18] : memref<2x64x256xf32, #tpu.memory_space<vmem>>, vector<1x64x256xf32>
    %22 = vector.shape_cast %21 : vector<1x64x256xf32> to vector<64x256xf32>
    %23 = vector.shape_cast %20 : vector<64x256xf32> to vector<1x64x256xf32>
    tpu.vector_store %arg6[%c0_16, %c0_17, %c0_18], %23 {strides = array<i32>} : memref<2x64x256xf32, #tpu.memory_space<vmem>>, vector<1x64x256xf32>,
    %cst_19 = arith.constant dense<0.000000e+00> : vector<64xf32>
    %24 = vector.multi_reduction <add>, %20, %cst_19 [1] : vector<64x256xf32> to vector<64xf32>
    %25 = vector.shape_cast %24 : vector<64xf32> to vector<64x1xf32>
    %26 = arith.addf %10, %25 : vector<64x1xf32>
    %c1 = arith.constant 1 : index
    %c0_20 = arith.constant 0 : index
    %c0_21 = arith.constant 0 : index
    %27 = vector.load %arg0[%c1, %c0_20, %c0_21] : memref<2x4x256xf32, #tpu.memory_space<vmem>>, vector<1x4x256xf32>
    %28 = vector.shape_cast %27 : vector<1x4x256xf32> to vector<4x256xf32>
    %29 = arith.truncf %28 : vector<4x256xf32> to vector<4x256xbf16>
    %cst_22 = arith.constant dense<0.000000e+00> : vector<32x256xf32>
    %30 = tpu.matmul %1, %29, %cst_22 {dimension_numbers = #tpu.dot_dimension_numbers<[1], [0], [0], [1], [0, 0, 1, 1], [], []>} : vector<32x4xbf16>, vector<4x256xbf16>, vector<32x256xf32> -> vector<32x256xf32>
    %31 = vector.broadcast %6 : vector<32x1xf32> to vector<32x256xf32>
    %32 = arith.addf %30, %31 : vector<32x256xf32>
    %cst_23 = arith.constant 0.000000e+00 : f32
    %33 = vector.broadcast %cst_23 : f32 to vector<32x256xf32>
    %34 = arith.maximumf %32, %33 : vector<32x256xf32>
    %35 = arith.truncf %34 : vector<32x256xf32> to vector<32x256xbf16>
    %cst_24 = arith.constant dense<0.000000e+00> : vector<64x256xf32>
    %36 = tpu.matmul %3, %35, %cst_24 {dimension_numbers = #tpu.dot_dimension_numbers<[1], [0], [0], [1], [0, 0, 1, 1], [], []>} : vector<64x32xbf16>, vector<32x256xbf16>, vector<64x256xf32> -> vector<64x256xf32>
    %c1_25 = arith.constant 1 : index
    %c0_26 = arith.constant 0 : index
    %c0_27 = arith.constant 0 : index
    %37 = vector.load %arg6[%c1_25, %c0_26, %c0_27] : memref<2x64x256xf32, #tpu.memory_space<vmem>>, vector<1x64x256xf32>
    %38 = vector.shape_cast %37 : vector<1x64x256xf32> to vector<64x256xf32>
    %39 = vector.shape_cast %36 : vector<64x256xf32> to vector<1x64x256xf32>
    tpu.vector_store %arg6[%c1_25, %c0_26, %c0_27], %39 {strides = array<i32>} : memref<2x64x256xf32, #tpu.memory_space<vmem>>, vector<1x64x256xf32>,
    %cst_28 = arith.constant dense<0.000000e+00> : vector<64xf32>
    %40 = vector.multi_reduction <add>, %36, %cst_28 [1] : vector<64x256xf32> to vector<64xf32>
    %41 = vector.shape_cast %40 : vector<64xf32> to vector<64x1xf32>
    %42 = arith.addf %26, %41 : vector<64x1xf32>
    %cst_29 = arith.constant 0.001953125 : f32
    %43 = vector.broadcast %cst_29 : f32 to vector<64x1xf32>
    %44 = arith.mulf %42, %43 : vector<64x1xf32>
    %cst_30 = arith.constant 0.000000e+00 : f32
    %45 = vector.broadcast %cst_30 : f32 to vector<64x1xf32>
    %c0_31 = arith.constant 0 : index
    %c0_32 = arith.constant 0 : index
    %c0_33 = arith.constant 0 : index
    %46 = vector.load %arg6[%c0_31, %c0_32, %c0_33] : memref<2x64x256xf32, #tpu.memory_space<vmem>>, vector<1x64x256xf32>
    %47 = vector.shape_cast %46 : vector<1x64x256xf32> to vector<64x256xf32>
    %48 = vector.broadcast %44 : vector<64x1xf32> to vector<64x256xf32>
    %49 = arith.subf %47, %48 : vector<64x256xf32>
    %50 = arith.mulf %49, %49 : vector<64x256xf32>
    %cst_34 = arith.constant dense<0.000000e+00> : vector<64xf32>
    %51 = vector.multi_reduction <add>, %50, %cst_34 [1] : vector<64x256xf32> to vector<64xf32>
    %52 = vector.shape_cast %51 : vector<64xf32> to vector<64x1xf32>
    %53 = arith.addf %45, %52 : vector<64x1xf32>
    %c1_35 = arith.constant 1 : index
    %c0_36 = arith.constant 0 : index
    %c0_37 = arith.constant 0 : index
    %54 = vector.load %arg6[%c1_35, %c0_36, %c0_37] : memref<2x64x256xf32, #tpu.memory_space<vmem>>, vector<1x64x256xf32>
    %55 = vector.shape_cast %54 : vector<1x64x256xf32> to vector<64x256xf32>
    %56 = vector.broadcast %44 : vector<64x1xf32> to vector<64x256xf32>
    %57 = arith.subf %55, %56 : vector<64x256xf32>
    %58 = arith.mulf %57, %57 : vector<64x256xf32>
    %cst_38 = arith.constant dense<0.000000e+00> : vector<64xf32>
    %59 = vector.multi_reduction <add>, %58, %cst_38 [1] : vector<64x256xf32> to vector<64xf32>
    %60 = vector.shape_cast %59 : vector<64xf32> to vector<64x1xf32>
    %61 = arith.addf %53, %60 : vector<64x1xf32>
    %cst_39 = arith.constant 0.001953125 : f32
    %62 = vector.broadcast %cst_39 : f32 to vector<64x1xf32>
    %63 = arith.mulf %61, %62 : vector<64x1xf32>
    %cst_40 = arith.constant 9.99999974E-6 : f32
    %64 = vector.broadcast %cst_40 : f32 to vector<64x1xf32>
    %65 = arith.addf %63, %64 : vector<64x1xf32>
    %66 = math.rsqrt %65 : vector<64x1xf32>
    %67 = arith.mulf %66, %7 : vector<64x1xf32>
    %68 = arith.mulf %44, %67 : vector<64x1xf32>
    %69 = arith.subf %8, %68 : vector<64x1xf32>
    %c0_41 = arith.constant 0 : index
    %c0_42 = arith.constant 0 : index
    %c0_43 = arith.constant 0 : index
    %70 = vector.load %arg6[%c0_41, %c0_42, %c0_43] : memref<2x64x256xf32, #tpu.memory_space<vmem>>, vector<1x64x256xf32>
    %71 = vector.shape_cast %70 : vector<1x64x256xf32> to vector<64x256xf32>
    %72 = vector.broadcast %67 : vector<64x1xf32> to vector<64x256xf32>
    %73 = arith.mulf %71, %72 : vector<64x256xf32>
    %74 = vector.broadcast %69 : vector<64x1xf32> to vector<64x256xf32>
    %75 = arith.addf %73, %74 : vector<64x256xf32>
    %cst_44 = arith.constant 0.000000e+00 : f32
    %76 = vector.broadcast %cst_44 : f32 to vector<64x256xf32>
    %77 = arith.maximumf %75, %76 : vector<64x256xf32>
    %78 = arith.truncf %77 : vector<64x256xf32> to vector<64x256xbf16>
    %cst_45 = arith.constant dense<0.000000e+00> : vector<16x256xf32>
    %79 = tpu.matmul %5, %78, %cst_45 {dimension_numbers = #tpu.dot_dimension_numbers<[1], [0], [0], [1], [0, 0, 1, 1], [], []>} : vector<16x64xbf16>, vector<64x256xbf16>, vector<16x256xf32> -> vector<16x256xf32>
    %80 = vector.broadcast %9 : vector<16x1xf32> to vector<16x256xf32>
    %81 = arith.addf %79, %80 : vector<16x256xf32>
    %c0_46 = arith.constant 0 : index
    %c0_47 = arith.constant 0 : index
    %c0_48 = arith.constant 0 : index
    %82 = vector.load %arg5[%c0_46, %c0_47, %c0_48] : memref<2x16x256xf32, #tpu.memory_space<vmem>>, vector<1x16x256xf32>
    %83 = vector.shape_cast %82 : vector<1x16x256xf32> to vector<16x256xf32>
    %84 = vector.shape_cast %81 : vector<16x256xf32> to vector<1x16x256xf32>
    tpu.vector_store %arg5[%c0_46, %c0_47, %c0_48], %84 {strides = array<i32>} : memref<2x16x256xf32, #tpu.memory_space<vmem>>, vector<1x16x256xf32>,
    %c1_49 = arith.constant 1 : index
    %c0_50 = arith.constant 0 : index
    %c0_51 = arith.constant 0 : index
    %85 = vector.load %arg6[%c1_49, %c0_50, %c0_51] : memref<2x64x256xf32, #tpu.memory_space<vmem>>, vector<1x64x256xf32>
    %86 = vector.shape_cast %85 : vector<1x64x256xf32> to vector<64x256xf32>
    %87 = vector.broadcast %67 : vector<64x1xf32> to vector<64x256xf32>
    %88 = arith.mulf %86, %87 : vector<64x256xf32>
    %89 = vector.broadcast %69 : vector<64x1xf32> to vector<64x256xf32>
    %90 = arith.addf %88, %89 : vector<64x256xf32>
    %cst_52 = arith.constant 0.000000e+00 : f32
    %91 = vector.broadcast %cst_52 : f32 to vector<64x256xf32>
    %92 = arith.maximumf %90, %91 : vector<64x256xf32>
    %93 = arith.truncf %92 : vector<64x256xf32> to vector<64x256xbf16>
    %cst_53 = arith.constant dense<0.000000e+00> : vector<16x256xf32>
    %94 = tpu.matmul %5, %93, %cst_53 {dimension_numbers = #tpu.dot_dimension_numbers<[1], [0], [0], [1], [0, 0, 1, 1], [], []>} : vector<16x64xbf16>, vector<64x256xbf16>, vector<16x256xf32> -> vector<16x256xf32>
    %95 = vector.broadcast %9 : vector<16x1xf32> to vector<16x256xf32>
    %96 = arith.addf %94, %95 : vector<16x256xf32>
    %c1_54 = arith.constant 1 : index
    %c0_55 = arith.constant 0 : index
    %c0_56 = arith.constant 0 : index
    %97 = vector.load %arg5[%c1_54, %c0_55, %c0_56] : memref<2x16x256xf32, #tpu.memory_space<vmem>>, vector<1x16x256xf32>
    %98 = vector.shape_cast %97 : vector<1x16x256xf32> to vector<16x256xf32>
    %99 = vector.shape_cast %96 : vector<16x256xf32> to vector<1x16x256xf32>
    tpu.vector_store %arg5[%c1_54, %c0_55, %c0_56], %99 {strides = array<i32>} : memref<2x16x256xf32, #tpu.memory_space<vmem>>, vector<1x16x256xf32>,
    return
  }
}

</mosaic_0001>

<llo_original>
// kernel: tpu_custom_call.1
$region0: #{tpu_custom_call.1}
  #allocation0 [shape = 'u32[]', space=smem, size = 0x4, offset = 0x4, fixed_abs, tag = 'smem constant byte address 0x4 - core index']
  #allocation1 [shape = 'u32[144,128]{1,0:T(1,128)}', space=vmem, size = 0x12000, scoped, tag = 'internal scratch']
  #allocation2 [shape = 'f32[2,64,256]{2,1,0:T(8,128)}', space=vmem, size = 0x20000, scoped, tag = 'scratch operand']
  %s0 = inlined_call_operand.vmem [shape: f32[2,4,256], index: 0, kind: input, shape index: {}]
  %s1 = inlined_call_operand.vmem [shape: f32[32,4], index: 1, kind: input, shape index: {}]
  %s2 = inlined_call_operand.vmem [shape: f32[64,32], index: 2, kind: input, shape index: {}]
  %s3 = inlined_call_operand.vmem [shape: f32[16,64], index: 3, kind: input, shape index: {}]
  %s4 = inlined_call_operand.vmem [shape: f32[176,1], index: 4, kind: input, shape index: {}]
  %s5 = inlined_call_operand.hbm [shape: f32[2,16,256], index: 5, kind: output, shape index: {}]
  %s6 = sld [smem:[#allocation0]]
  $region30: #{tpu_custom_call.1} parent=0
    _
  %s8 = ssub.s32 1, %s6
  %s9 = scalar_select 0, %s8, %s6
  $region1: #{tpu_custom_call.1} parent=0
    #allocation3 [shape = 'u8[32768]{0}', space=vmem, size = 0x8000, scoped, tag = 'output window, operand 0, single buffered']
    #allocation4 [shape = 's32[1]{0}', space=sflag, size = 0x4, scoped, tag = 'scoped memory for tpu_custom_call.1']
    %10 = vsyncpa [#allocation4], 0
    // Predicated region
    $region2: #{tpu_custom_call.1} parent=1 // pred_check
      _
    $region3: #{tpu_custom_call.1} parent=1 // pred_check_branch
      %12 = sbr.rel (0) target = $region5
    $region4: #{tpu_custom_call.1} parent=1 // pred_region
      _
    $region5: #{tpu_custom_call.1} parent=1 // pred_fallthru
      _
    // Predicated region
    $region6: #{tpu_custom_call.1} parent=1 // pred_check
      _
    $region7: #{tpu_custom_call.1} parent=1 // pred_check_branch
      %14 = sbr.rel (0) target = $region9
    $region8: #{tpu_custom_call.1} parent=1 // pred_region
      _
    $region9: #{tpu_custom_call.1} parent=1 // pred_fallthru
      _
    // Predicated region
    $region10: #{tpu_custom_call.1} parent=1 // pred_check
      _
    $region11: #{tpu_custom_call.1} parent=1 // pred_check_branch
      %16 = sbr.rel (0) target = $region13
    $region12: #{tpu_custom_call.1} parent=1 // pred_region
      _
    $region13: #{tpu_custom_call.1} parent=1 // pred_fallthru
      _
    // Predicated region
    $region14: #{tpu_custom_call.1} parent=1 // pred_check
      _
    $region15: #{tpu_custom_call.1} parent=1 // pred_check_branch
      %18 = sbr.rel (0) target = $region17
    $region16: #{tpu_custom_call.1} parent=1 // pred_region
      _
    $region17: #{tpu_custom_call.1} parent=1 // pred_fallthru
      _
    // Predicated region
    $region18: #{tpu_custom_call.1} parent=1 // pred_check
      _
    $region19: #{tpu_custom_call.1} parent=1 // pred_check_branch
      %20 = sbr.rel (0) target = $region21
    $region20: #{tpu_custom_call.1} parent=1 // pred_region
      _
    $region21: #{tpu_custom_call.1} parent=1 // pred_fallthru
      _
    %v22 = vld [vmem:[%s1] sm:$0xff]
    %v23 = vld [vmem:[%s1 + $0x8] sm:$0xff]
    %v24 = vld [vmem:[%s1 + $0x10] sm:$0xff]
    %v25 = vld [vmem:[%s1 + $0x18] sm:$0xff]
    %v26 = vpack.c.bf16 %v23, %v22
    %v27 = vpack.c.bf16 %v25, %v24
    %v28 = vld [vmem:[%s2] sm:$0xff]
    %v29 = vld [vmem:[%s2 + $0x8] sm:$0xff]
    %v30 = vld [vmem:[%s2 + $0x10] sm:$0xff]
    %v31 = vld [vmem:[%s2 + $0x18] sm:$0xff]
    %v32 = vld [vmem:[%s2 + $0x20] sm:$0xff]
    %v33 = vld [vmem:[%s2 + $0x28] sm:$0xff]
    %v34 = vld [vmem:[%s2 + $0x30] sm:$0xff]
    %v35 = vld [vmem:[%s2 + $0x38] sm:$0xff]
    %v36 = vpack.c.bf16 %v29, %v28
    %v37 = vpack.c.bf16 %v31, %v30
    %v38 = vpack.c.bf16 %v33, %v32
    %v39 = vpack.c.bf16 %v35, %v34
    %v40 = vld [vmem:[%s3] sm:$0xff]
    %v41 = vld [vmem:[%s3 + $0x8] sm:$0xff]
    %v42 = vpack.c.bf16 %v41, %v40
    %v43 = vld [vmem:[%s4] sm:$0xff]
    %v44 = vld [vmem:[%s4 + $0x8] sm:$0xff]
    %v45 = vld [vmem:[%s4 + $0x10] sm:$0xff]
    %v46 = vld [vmem:[%s4 + $0x18] sm:$0xff]
    %v47 = vld [vmem:[%s4 + $0x20] sm:$0xff]
    %v48 = vld [vmem:[%s4 + $0x28] sm:$0xff]
    %v49 = vld [vmem:[%s4 + $0x30] sm:$0xff]
    %v50 = vld [vmem:[%s4 + $0x38] sm:$0xff]
    %v51 = vld [vmem:[%s4 + $0x40] sm:$0xff]
    %v52 = vld [vmem:[%s4 + $0x48] sm:$0xff]
    %v53 = vld [vmem:[%s4 + $0x50] sm:$0xff]
    %v54 = vld [vmem:[%s4 + $0x58] sm:$0xff]
    %v55 = vld [vmem:[%s4 + $0x60] sm:$0xff]
    %v56 = vld [vmem:[%s4 + $0x68] sm:$0xff]
    %v57 = vld [vmem:[%s4 + $0x70] sm:$0xff]
    %v58 = vld [vmem:[%s4 + $0x78] sm:$0xff]
    %v59 = vld [vmem:[%s4 + $0x80] sm:$0xff]
    %v60 = vld [vmem:[%s4 + $0x88] sm:$0xff]
    %v61 = vld [vmem:[%s4 + $0x90] sm:$0xff]
    %v62 = vld [vmem:[%s4 + $0x98] sm:$0xff]
    %v63 = vld [vmem:[%s4 + $0xa0] sm:$0xff]
    %v64 = vld [vmem:[%s4 + $0xa8] sm:$0xff]
    %v65 = vld [vmem:[%s0] sm:$0xff]
    %v67 = vcombine.high %v65, %v65
    %v69 = vpack.c.bf16 %v65, %v65
    %v70 = vpack.c.bf16 %v67, %v67
    %72 = vset.pattern.permute.xlu0 0
    %73 = vperm.xlu0 %72, %v43
    %v74 = vpop.permute.xlu0 %73
    %77 = vset.pattern.permute.xlu0 0
    %78 = vperm.xlu0 %77, %v44
    %v79 = vpop.permute.xlu0 %78
    %82 = vset.pattern.permute.xlu0 0
    %83 = vperm.xlu0 %82, %v45
    %v84 = vpop.permute.xlu0 %83
    %87 = vset.pattern.permute.xlu0 0
    %88 = vperm.xlu0 %87, %v46
    %v89 = vpop.permute.xlu0 %88
    %vm91 = vcmask 31744
    %v93 = vsel %vm91, %v26, 0
    %v96 = vsel %vm91, %v27, 0
    %vm98 = vcmask 1041408
    %v100 = vsel %vm98, %v69, 0
    %v103 = vsel %vm98, %v70, 0
    %105 = vmatprep.subr.bf16.mxu0 %v103
    %106 = vmatpush1.bf16.msra.mxu0 %v100
    %107 = vmatprep.subr.bf16.mxu0 0
    %108 = vmatpush1.bf16.msra.mxu0 0
    %109 = vmatprep.subr.bf16.mxu0 0
    %110 = vmatpush1.bf16.msra.mxu0 0
    %111 = vmatprep.subr.bf16.mxu0 0
    %112 = vmatpush1.bf16.msra.mxu0 0
    %113 = vmatprep.subr.bf16.mxu0 0
    %114 = vmatpush1.bf16.msra.mxu0 0
    %115 = vmatprep.subr.bf16.mxu0 0
    %116 = vmatpush1.bf16.msra.mxu0 0
    %117 = vmatprep.subr.bf16.mxu0 0
    %118 = vmatpush1.bf16.msra.mxu0 0
    %119 = vmatprep.subr.bf16.mxu0 0
    %120 = vmatpush1.bf16.msra.mxu0 0
    %121 = vmatprep.subr.bf16.mxu0 0
    %122 = vmatpush1.bf16.msra.mxu0 0
    %123 = vmatprep.subr.bf16.mxu0 0
    %124 = vmatpush1.bf16.msra.mxu0 0
    %125 = vmatprep.subr.bf16.mxu0 0
    %126 = vmatpush1.bf16.msra.mxu0 0
    %127 = vmatprep.subr.bf16.mxu0 0
    %128 = vmatpush1.bf16.msra.mxu0 0
    %129 = vmatprep.subr.bf16.mxu0 0
    %130 = vmatpush1.bf16.msra.mxu0 0
    %131 = vmatprep.subr.bf16.mxu0 0
    %132 = vmatpush1.bf16.msra.mxu0 0
    %133 = vmatprep.subr.bf16.mxu0 0
    %134 = vmatpush1.bf16.msra.mxu0 0
    %135 = vmatprep.subr.bf16.mxu0 0
    %136 = vmatpush1.bf16.msra.mxu0 0
    %137 = vmatprep.mubr.bf16.mxu0 0
    %138 = vmatmul.mubr.bf16.gmra.mrb[0].mxu0 %v93
    %v139 = vpop.f32.mrb[0].mxu0
    %v140 = vadd.f32 %v74, %v139
    %v141 = vpop.f32.mrb[0].mxu0
    %v142 = vadd.f32 %v74, %v141
    %v143 = vpop.f32.mrb[0].mxu0
    %v144 = vadd.f32 %v79, %v143
    %v145 = vpop.f32.mrb[0].mxu0
    %v146 = vadd.f32 %v79, %v145
    %147 = vmatprep.mubr.bf16.mxu0 0
    %148 = vmatmul.mubr.bf16.gmra.mrb[0].mxu0 %v96
    %v149 = vpop.f32.mrb[0].mxu0
    %v150 = vadd.f32 %v84, %v149
    %v151 = vpop.f32.mrb[0].mxu0
    %v152 = vadd.f32 %v84, %v151
    %v153 = vpop.f32.mrb[0].mxu0
    %v154 = vadd.f32 %v89, %v153
    %v155 = vpop.f32.mrb[0].mxu0
    %v156 = vadd.f32 %v89, %v155
    %157 = vdwg.mxu0
    %v158 = vmax.f32 %v140, 0.0
    %v159 = vmax.f32 %v142, 0.0
    %v160 = vmax.f32 %v144, 0.0
    %v161 = vmax.f32 %v146, 0.0
    %v162 = vmax.f32 %v150, 0.0
    %v163 = vmax.f32 %v152, 0.0
    %v164 = vmax.f32 %v154, 0.0
    %v165 = vmax.f32 %v156, 0.0
    %v166 = vpack.c.bf16 %v160, %v158
    %v167 = vpack.c.bf16 %v161, %v159
    %v168 = vpack.c.bf16 %v164, %v162
    %v169 = vpack.c.bf16 %v165, %v163
    %vm170 = vcmask 261120
    %v172 = vsel %vm170, %v36, 0
    %v175 = vsel %vm170, %v37, 0
    %v178 = vsel %vm170, %v38, 0
    %v181 = vsel %vm170, %v39, 0
    %183 = vmatprep.subr.bf16.mxu0 %v167
    %184 = vmatpush1.bf16.msra.mxu0 %v166
    %185 = vmatprep.subr.bf16.mxu0 %v169
    %186 = vmatpush1.bf16.msra.mxu0 %v168
    %187 = vmatprep.subr.bf16.mxu0 0
    %188 = vmatpush1.bf16.msra.mxu0 0
    %189 = vmatprep.subr.bf16.mxu0 0
    %190 = vmatpush1.bf16.msra.mxu0 0
    %191 = vmatprep.subr.bf16.mxu0 0
    %192 = vmatpush1.bf16.msra.mxu0 0
    %193 = vmatprep.subr.bf16.mxu0 0
    %194 = vmatpush1.bf16.msra.mxu0 0
    %195 = vmatprep.subr.bf16.mxu0 0
    %196 = vmatpush1.bf16.msra.mxu0 0
    %197 = vmatprep.subr.bf16.mxu0 0
    %198 = vmatpush1.bf16.msra.mxu0 0
    %199 = vmatprep.subr.bf16.mxu0 0
    %200 = vmatpush1.bf16.msra.mxu0 0
    %201 = vmatprep.subr.bf16.mxu0 0
    %202 = vmatpush1.bf16.msra.mxu0 0
    %203 = vmatprep.subr.bf16.mxu0 0
    %204 = vmatpush1.bf16.msra.mxu0 0
    %205 = vmatprep.subr.bf16.mxu0 0
    %206 = vmatpush1.bf16.msra.mxu0 0
    %207 = vmatprep.subr.bf16.mxu0 0
    %208 = vmatpush1.bf16.msra.mxu0 0
    %209 = vmatprep.subr.bf16.mxu0 0
    %210 = vmatpush1.bf16.msra.mxu0 0
    %211 = vmatprep.subr.bf16.mxu0 0
    %212 = vmatpush1.bf16.msra.mxu0 0
    %213 = vmatprep.subr.bf16.mxu0 0
    %214 = vmatpush1.bf16.msra.mxu0 0
    %215 = vmatprep.mubr.bf16.mxu0 0
    %216 = vmatmul.mubr.bf16.gmra.mrb[0].mxu0 %v172
    %v217 = vpop.f32.mrb[0].mxu0
    %v218 = vadd.f32 0.0, %v217
    %v219 = vpop.f32.mrb[0].mxu0
    %v220 = vadd.f32 0.0, %v219
    %v221 = vpop.f32.mrb[0].mxu0
    %v222 = vadd.f32 0.0, %v221
    %v223 = vpop.f32.mrb[0].mxu0
    %v224 = vadd.f32 0.0, %v223
    %225 = vmatprep.mubr.bf16.mxu0 0
    %226 = vmatmul.mubr.bf16.gmra.mrb[0].mxu0 %v175
    %v227 = vpop.f32.mrb[0].mxu0
    %v228 = vadd.f32 0.0, %v227
    %v229 = vpop.f32.mrb[0].mxu0
    %v230 = vadd.f32 0.0, %v229
    %v231 = vpop.f32.mrb[0].mxu0
    %v232 = vadd.f32 0.0, %v231
    %v233 = vpop.f32.mrb[0].mxu0
    %v234 = vadd.f32 0.0, %v233
    %235 = vmatprep.mubr.bf16.mxu0 0
    %236 = vmatmul.mubr.bf16.gmra.mrb[0].mxu0 %v178
    %v237 = vpop.f32.mrb[0].mxu0
    %v238 = vadd.f32 0.0, %v237
    %v239 = vpop.f32.mrb[0].mxu0
    %v240 = vadd.f32 0.0, %v239
    %v241 = vpop.f32.mrb[0].mxu0
    %v242 = vadd.f32 0.0, %v241
    %v243 = vpop.f32.mrb[0].mxu0
    %v244 = vadd.f32 0.0, %v243
    %245 = vmatprep.mubr.bf16.mxu0 0
    %246 = vmatmul.mubr.bf16.gmra.mrb[0].mxu0 %v181
    %v247 = vpop.f32.mrb[0].mxu0
    %v248 = vadd.f32 0.0, %v247
    %v249 = vpop.f32.mrb[0].mxu0
    %v250 = vadd.f32 0.0, %v249
    %v251 = vpop.f32.mrb[0].mxu0
    %v252 = vadd.f32 0.0, %v251
    %v253 = vpop.f32.mrb[0].mxu0
    %v254 = vadd.f32 0.0, %v253
    %255 = vdwg.mxu0
    %256 = vst [vmem:[#allocation2] sm:$0xff] %v218
    %257 = vst [vmem:[#allocation2 + $0x8] sm:$0xff] %v220
    %258 = vst [vmem:[#allocation2 + $0x10] sm:$0xff] %v222
    %259 = vst [vmem:[#allocation2 + $0x18] sm:$0xff] %v224
    %260 = vst [vmem:[#allocation2 + $0x20] sm:$0xff] %v228
    %261 = vst [vmem:[#allocation2 + $0x28] sm:$0xff] %v230
    %262 = vst [vmem:[#allocation2 + $0x30] sm:$0xff] %v232
    %263 = vst [vmem:[#allocation2 + $0x38] sm:$0xff] %v234
    %264 = vst [vmem:[#allocation2 + $0x40] sm:$0xff] %v238
    %265 = vst [vmem:[#allocation2 + $0x48] sm:$0xff] %v240
    %266 = vst [vmem:[#allocation2 + $0x50] sm:$0xff] %v242
    %267 = vst [vmem:[#allocation2 + $0x58] sm:$0xff] %v244
    %268 = vst [vmem:[#allocation2 + $0x60] sm:$0xff] %v248
    %269 = vst [vmem:[#allocation2 + $0x68] sm:$0xff] %v250
    %270 = vst [vmem:[#allocation2 + $0x70] sm:$0xff] %v252
    %271 = vst [vmem:[#allocation2 + $0x78] sm:$0xff] %v254
    %v272 = vadd.f32 %v218, %v220
    %273 = vadd.xlane.f32.xlu0 %v272
    %v274 = vpop.xlane.xlu0 %273
    %v275 = vadd.f32 %v222, %v224
    %276 = vadd.xlane.f32.xlu0 %v275
    %v277 = vpop.xlane.xlu0 %276
    %v278 = vadd.f32 %v228, %v230
    %279 = vadd.xlane.f32.xlu0 %v278
    %v280 = vpop.xlane.xlu0 %279
    %v281 = vadd.f32 %v232, %v234
    %282 = vadd.xlane.f32.xlu0 %v281
    %v283 = vpop.xlane.xlu0 %282
    %v284 = vadd.f32 %v238, %v240
    %285 = vadd.xlane.f32.xlu0 %v284
    %v286 = vpop.xlane.xlu0 %285
    %v287 = vadd.f32 %v242, %v244
    %288 = vadd.xlane.f32.xlu0 %v287
    %v289 = vpop.xlane.xlu0 %288
    %v290 = vadd.f32 %v248, %v250
    %291 = vadd.xlane.f32.xlu0 %v290
    %v292 = vpop.xlane.xlu0 %291
    %v293 = vadd.f32 %v252, %v254
    %294 = vadd.xlane.f32.xlu0 %v293
    %v295 = vpop.xlane.xlu0 %294
    %v296 = vadd.f32 %v274, 0.0
    %v297 = vadd.f32 %v277, 0.0
    %v298 = vadd.f32 %v280, 0.0
    %v299 = vadd.f32 %v283, 0.0
    %v300 = vadd.f32 %v286, 0.0
    %v301 = vadd.f32 %v289, 0.0
    %v302 = vadd.f32 %v292, 0.0
    %v303 = vadd.f32 %v295, 0.0
    %s304 = scalar_lea.vmem %s0, 8
    %v305 = vld [vmem:[%s304] sm:$0xff]
    %v307 = vcombine.high %v305, %v305
    %v309 = vpack.c.bf16 %v305, %v305
    %v310 = vpack.c.bf16 %v307, %v307
    %v312 = vsel %vm98, %v309, 0
    %v315 = vsel %vm98, %v310, 0
    %317 = vmatprep.subr.bf16.mxu0 %v315
    %318 = vmatpush1.bf16.msra.mxu0 %v312
    %319 = vmatprep.subr.bf16.mxu0 0
    %320 = vmatpush1.bf16.msra.mxu0 0
    %321 = vmatprep.subr.bf16.mxu0 0
    %322 = vmatpush1.bf16.msra.mxu0 0
    %323 = vmatprep.subr.bf16.mxu0 0
    %324 = vmatpush1.bf16.msra.mxu0 0
    %325 = vmatprep.subr.bf16.mxu0 0
    %326 = vmatpush1.bf16.msra.mxu0 0
    %327 = vmatprep.subr.bf16.mxu0 0
    %328 = vmatpush1.bf16.msra.mxu0 0
    %329 = vmatprep.subr.bf16.mxu0 0
    %330 = vmatpush1.bf16.msra.mxu0 0
    %331 = vmatprep.subr.bf16.mxu0 0
    %332 = vmatpush1.bf16.msra.mxu0 0
    %333 = vmatprep.subr.bf16.mxu0 0
    %334 = vmatpush1.bf16.msra.mxu0 0
    %335 = vmatprep.subr.bf16.mxu0 0
    %336 = vmatpush1.bf16.msra.mxu0 0
    %337 = vmatprep.subr.bf16.mxu0 0
    %338 = vmatpush1.bf16.msra.mxu0 0
    %339 = vmatprep.subr.bf16.mxu0 0
    %340 = vmatpush1.bf16.msra.mxu0 0
    %341 = vmatprep.subr.bf16.mxu0 0
    %342 = vmatpush1.bf16.msra.mxu0 0
    %343 = vmatprep.subr.bf16.mxu0 0
    %344 = vmatpush1.bf16.msra.mxu0 0
    %345 = vmatprep.subr.bf16.mxu0 0
    %346 = vmatpush1.bf16.msra.mxu0 0
    %347 = vmatprep.subr.bf16.mxu0 0
    %348 = vmatpush1.bf16.msra.mxu0 0
    %349 = vmatprep.mubr.bf16.mxu0 0
    %350 = vmatmul.mubr.bf16.gmra.mrb[0].mxu0 %v93
    %v351 = vpop.f32.mrb[0].mxu0
    %v352 = vadd.f32 %v74, %v351
    %v353 = vpop.f32.mrb[0].mxu0
    %v354 = vadd.f32 %v74, %v353
    %v355 = vpop.f32.mrb[0].mxu0
    %v356 = vadd.f32 %v79, %v355
    %v357 = vpop.f32.mrb[0].mxu0
    %v358 = vadd.f32 %v79, %v357
    %359 = vmatprep.mubr.bf16.mxu0 0
    %360 = vmatmul.mubr.bf16.gmra.mrb[0].mxu0 %v96
    %v361 = vpop.f32.mrb[0].mxu0
    %v362 = vadd.f32 %v84, %v361
    %v363 = vpop.f32.mrb[0].mxu0
    %v364 = vadd.f32 %v84, %v363
    %v365 = vpop.f32.mrb[0].mxu0
    %v366 = vadd.f32 %v89, %v365
    %v367 = vpop.f32.mrb[0].mxu0
    %v368 = vadd.f32 %v89, %v367
    %369 = vdwg.mxu0
    %v370 = vmax.f32 %v352, 0.0
    %v371 = vmax.f32 %v354, 0.0
    %v372 = vmax.f32 %v356, 0.0
    %v373 = vmax.f32 %v358, 0.0
    %v374 = vmax.f32 %v362, 0.0
    %v375 = vmax.f32 %v364, 0.0
    %v376 = vmax.f32 %v366, 0.0
    %v377 = vmax.f32 %v368, 0.0
    %v378 = vpack.c.bf16 %v372, %v370
    %v379 = vpack.c.bf16 %v373, %v371
    %v380 = vpack.c.bf16 %v376, %v374
    %v381 = vpack.c.bf16 %v377, %v375
    %382 = vmatprep.subr.bf16.mxu0 %v379
    %383 = vmatpush1.bf16.msra.mxu0 %v378
    %384 = vmatprep.subr.bf16.mxu0 %v381
    %385 = vmatpush1.bf16.msra.mxu0 %v380
    %386 = vmatprep.subr.bf16.mxu0 0
    %387 = vmatpush1.bf16.msra.mxu0 0
    %388 = vmatprep.subr.bf16.mxu0 0
    %389 = vmatpush1.bf16.msra.mxu0 0
    %390 = vmatprep.subr.bf16.mxu0 0
    %391 = vmatpush1.bf16.msra.mxu0 0
    %392 = vmatprep.subr.bf16.mxu0 0
    %393 = vmatpush1.bf16.msra.mxu0 0
    %394 = vmatprep.subr.bf16.mxu0 0
    %395 = vmatpush1.bf16.msra.mxu0 0
    %396 = vmatprep.subr.bf16.mxu0 0
    %397 = vmatpush1.bf16.msra.mxu0 0
    %398 = vmatprep.subr.bf16.mxu0 0
    %399 = vmatpush1.bf16.msra.mxu0 0
    %400 = vmatprep.subr.bf16.mxu0 0
    %401 = vmatpush1.bf16.msra.mxu0 0
    %402 = vmatprep.subr.bf16.mxu0 0
    %403 = vmatpush1.bf16.msra.mxu0 0
    %404 = vmatprep.subr.bf16.mxu0 0
    %405 = vmatpush1.bf16.msra.mxu0 0
    %406 = vmatprep.subr.bf16.mxu0 0
    %407 = vmatpush1.bf16.msra.mxu0 0
    %408 = vmatprep.subr.bf16.mxu0 0
    %409 = vmatpush1.bf16.msra.mxu0 0
    %410 = vmatprep.subr.bf16.mxu0 0
    %411 = vmatpush1.bf16.msra.mxu0 0
    %412 = vmatprep.subr.bf16.mxu0 0
    %413 = vmatpush1.bf16.msra.mxu0 0
    %414 = vmatprep.mubr.bf16.mxu0 0
    %415 = vmatmul.mubr.bf16.gmra.mrb[0].mxu0 %v172
    %v416 = vpop.f32.mrb[0].mxu0
    %v417 = vadd.f32 0.0, %v416
    %v418 = vpop.f32.mrb[0].mxu0
    %v419 = vadd.f32 0.0, %v418
    %v420 = vpop.f32.mrb[0].mxu0
    %v421 = vadd.f32 0.0, %v420
    %v422 = vpop.f32.mrb[0].mxu0
    %v423 = vadd.f32 0.0, %v422
    %424 = vmatprep.mubr.bf16.mxu0 0
    %425 = vmatmul.mubr.bf16.gmra.mrb[0].mxu0 %v175
    %v426 = vpop.f32.mrb[0].mxu0
    %v427 = vadd.f32 0.0, %v426
    %v428 = vpop.f32.mrb[0].mxu0
    %v429 = vadd.f32 0.0, %v428
    %v430 = vpop.f32.mrb[0].mxu0
    %v431 = vadd.f32 0.0, %v430
    %v432 = vpop.f32.mrb[0].mxu0
    %v433 = vadd.f32 0.0, %v432
    %434 = vmatprep.mubr.bf16.mxu0 0
    %435 = vmatmul.mubr.bf16.gmra.mrb[0].mxu0 %v178
    %v436 = vpop.f32.mrb[0].mxu0
    %v437 = vadd.f32 0.0, %v436
    %v438 = vpop.f32.mrb[0].mxu0
    %v439 = vadd.f32 0.0, %v438
    %v440 = vpop.f32.mrb[0].mxu0
    %v441 = vadd.f32 0.0, %v440
    %v442 = vpop.f32.mrb[0].mxu0
    %v443 = vadd.f32 0.0, %v442
    %444 = vmatprep.mubr.bf16.mxu0 0
    %445 = vmatmul.mubr.bf16.gmra.mrb[0].mxu0 %v181
    %v446 = vpop.f32.mrb[0].mxu0
    %v447 = vadd.f32 0.0, %v446
    %v448 = vpop.f32.mrb[0].mxu0
    %v449 = vadd.f32 0.0, %v448
    %v450 = vpop.f32.mrb[0].mxu0
    %v451 = vadd.f32 0.0, %v450
    %v452 = vpop.f32.mrb[0].mxu0
    %v453 = vadd.f32 0.0, %v452
    %454 = vdwg.mxu0
    %s455 = scalar_lea.vmem [#allocation2], 128
    %456 = vst [vmem:[%s455] sm:$0xff] %v417
    %457 = vst [vmem:[%s455 + $0x8] sm:$0xff] %v419
    %458 = vst [vmem:[%s455 + $0x10] sm:$0xff] %v421
    %459 = vst [vmem:[%s455 + $0x18] sm:$0xff] %v423
    %460 = vst [vmem:[%s455 + $0x20] sm:$0xff] %v427
    %461 = vst [vmem:[%s455 + $0x28] sm:$0xff] %v429
    %462 = vst [vmem:[%s455 + $0x30] sm:$0xff] %v431
    %463 = vst [vmem:[%s455 + $0x38] sm:$0xff] %v433
    %464 = vst [vmem:[%s455 + $0x40] sm:$0xff] %v437
    %465 = vst [vmem:[%s455 + $0x48] sm:$0xff] %v439
    %466 = vst [vmem:[%s455 + $0x50] sm:$0xff] %v441
    %467 = vst [vmem:[%s455 + $0x58] sm:$0xff] %v443
    %468 = vst [vmem:[%s455 + $0x60] sm:$0xff] %v447
    %469 = vst [vmem:[%s455 + $0x68] sm:$0xff] %v449
    %470 = vst [vmem:[%s455 + $0x70] sm:$0xff] %v451
    %471 = vst [vmem:[%s455 + $0x78] sm:$0xff] %v453
    %v472 = vadd.f32 %v417, %v419
    %473 = vadd.xlane.f32.xlu0 %v472
    %v474 = vpop.xlane.xlu0 %473
    %v475 = vadd.f32 %v421, %v423
    %476 = vadd.xlane.f32.xlu0 %v475
    %v477 = vpop.xlane.xlu0 %476
    %v478 = vadd.f32 %v427, %v429
    %479 = vadd.xlane.f32.xlu0 %v478
    %v480 = vpop.xlane.xlu0 %479
    %v481 = vadd.f32 %v431, %v433
    %482 = vadd.xlane.f32.xlu0 %v481
    %v483 = vpop.xlane.xlu0 %482
    %v484 = vadd.f32 %v437, %v439
    %485 = vadd.xlane.f32.xlu0 %v484
    %v486 = vpop.xlane.xlu0 %485
    %v487 = vadd.f32 %v441, %v443
    %488 = vadd.xlane.f32.xlu0 %v487
    %v489 = vpop.xlane.xlu0 %488
    %v490 = vadd.f32 %v447, %v449
    %491 = vadd.xlane.f32.xlu0 %v490
    %v492 = vpop.xlane.xlu0 %491
    %v493 = vadd.f32 %v451, %v453
    %494 = vadd.xlane.f32.xlu0 %v493
    %v495 = vpop.xlane.xlu0 %494
    %v496 = vadd.f32 %v296, %v474
    %v497 = vadd.f32 %v297, %v477
    %v498 = vadd.f32 %v298, %v480
    %v499 = vadd.f32 %v299, %v483
    %v500 = vadd.f32 %v300, %v486
    %v501 = vadd.f32 %v301, %v489
    %v502 = vadd.f32 %v302, %v492
    %v503 = vadd.f32 %v303, %v495
    %v504 = vmul.f32 %v496, 0.001953125
    %v505 = vmul.f32 %v497, 0.001953125
    %v506 = vmul.f32 %v498, 0.001953125
    %v507 = vmul.f32 %v499, 0.001953125
    %v508 = vmul.f32 %v500, 0.001953125
    %v509 = vmul.f32 %v501, 0.001953125
    %v510 = vmul.f32 %v502, 0.001953125
    %v511 = vmul.f32 %v503, 0.001953125
    %v512 = vld [vmem:[#allocation2] sm:$0xff]
    %v513 = vld [vmem:[#allocation2 + $0x8] sm:$0xff]
    %v514 = vld [vmem:[#allocation2 + $0x10] sm:$0xff]
    %v515 = vld [vmem:[#allocation2 + $0x18] sm:$0xff]
    %v516 = vld [vmem:[#allocation2 + $0x20] sm:$0xff]
    %v517 = vld [vmem:[#allocation2 + $0x28] sm:$0xff]
    %v518 = vld [vmem:[#allocation2 + $0x30] sm:$0xff]
    %v519 = vld [vmem:[#allocation2 + $0x38] sm:$0xff]
    %v520 = vld [vmem:[#allocation2 + $0x40] sm:$0xff]
    %v521 = vld [vmem:[#allocation2 + $0x48] sm:$0xff]
    %v522 = vld [vmem:[#allocation2 + $0x50] sm:$0xff]
    %v523 = vld [vmem:[#allocation2 + $0x58] sm:$0xff]
    %v524 = vld [vmem:[#allocation2 + $0x60] sm:$0xff]
    %v525 = vld [vmem:[#allocation2 + $0x68] sm:$0xff]
    %v526 = vld [vmem:[#allocation2 + $0x70] sm:$0xff]
    %v527 = vld [vmem:[#allocation2 + $0x78] sm:$0xff]
    %v528 = vsub.f32 %v512, %v504
    %v529 = vsub.f32 %v513, %v504
    %v530 = vsub.f32 %v514, %v505
    %v531 = vsub.f32 %v515, %v505
    %v532 = vsub.f32 %v516, %v506
    %v533 = vsub.f32 %v517, %v506
    %v534 = vsub.f32 %v518, %v507
    %v535 = vsub.f32 %v519, %v507
    %v536 = vsub.f32 %v520, %v508
    %v537 = vsub.f32 %v521, %v508
    %v538 = vsub.f32 %v522, %v509
    %v539 = vsub.f32 %v523, %v509
    %v540 = vsub.f32 %v524, %v510
    %v541 = vsub.f32 %v525, %v510
    %v542 = vsub.f32 %v526, %v511
    %v543 = vsub.f32 %v527, %v511
    %v544 = vmul.f32 %v528, %v528
    %v545 = vmul.f32 %v529, %v529
    %v546 = vmul.f32 %v530, %v530
    %v547 = vmul.f32 %v531, %v531
    %v548 = vmul.f32 %v532, %v532
    %v549 = vmul.f32 %v533, %v533
    %v550 = vmul.f32 %v534, %v534
    %v551 = vmul.f32 %v535, %v535
    %v552 = vmul.f32 %v536, %v536
    %v553 = vmul.f32 %v537, %v537
    %v554 = vmul.f32 %v538, %v538
    %v555 = vmul.f32 %v539, %v539
    %v556 = vmul.f32 %v540, %v540
    %v557 = vmul.f32 %v541, %v541
    %v558 = vmul.f32 %v542, %v542
    %v559 = vmul.f32 %v543, %v543
    %v560 = vadd.f32 %v544, %v545
    %561 = vadd.xlane.f32.xlu0 %v560
    %v562 = vpop.xlane.xlu0 %561
    %v563 = vadd.f32 %v546, %v547
    %564 = vadd.xlane.f32.xlu0 %v563
    %v565 = vpop.xlane.xlu0 %564
    %v566 = vadd.f32 %v548, %v549
    %567 = vadd.xlane.f32.xlu0 %v566
    %v568 = vpop.xlane.xlu0 %567
    %v569 = vadd.f32 %v550, %v551
    %570 = vadd.xlane.f32.xlu0 %v569
    %v571 = vpop.xlane.xlu0 %570
    %v572 = vadd.f32 %v552, %v553
    %573 = vadd.xlane.f32.xlu0 %v572
    %v574 = vpop.xlane.xlu0 %573
    %v575 = vadd.f32 %v554, %v555
    %576 = vadd.xlane.f32.xlu0 %v575
    %v577 = vpop.xlane.xlu0 %576
    %v578 = vadd.f32 %v556, %v557
    %579 = vadd.xlane.f32.xlu0 %v578
    %v580 = vpop.xlane.xlu0 %579
    %v581 = vadd.f32 %v558, %v559
    %582 = vadd.xlane.f32.xlu0 %v581
    %v583 = vpop.xlane.xlu0 %582
    %v584 = vadd.f32 %v562, 0.0
    %v585 = vadd.f32 %v565, 0.0
    %v586 = vadd.f32 %v568, 0.0
    %v587 = vadd.f32 %v571, 0.0
    %v588 = vadd.f32 %v574, 0.0
    %v589 = vadd.f32 %v577, 0.0
    %v590 = vadd.f32 %v580, 0.0
    %v591 = vadd.f32 %v583, 0.0
    %v592 = vld [vmem:[%s455] sm:$0xff]
    %v593 = vld [vmem:[%s455 + $0x8] sm:$0xff]
    %v594 = vld [vmem:[%s455 + $0x10] sm:$0xff]
    %v595 = vld [vmem:[%s455 + $0x18] sm:$0xff]
    %v596 = vld [vmem:[%s455 + $0x20] sm:$0xff]
    %v597 = vld [vmem:[%s455 + $0x28] sm:$0xff]
    %v598 = vld [vmem:[%s455 + $0x30] sm:$0xff]
    %v599 = vld [vmem:[%s455 + $0x38] sm:$0xff]
    %v600 = vld [vmem:[%s455 + $0x40] sm:$0xff]
    %v601 = vld [vmem:[%s455 + $0x48] sm:$0xff]
    %v602 = vld [vmem:[%s455 + $0x50] sm:$0xff]
    %v603 = vld [vmem:[%s455 + $0x58] sm:$0xff]
    %v604 = vld [vmem:[%s455 + $0x60] sm:$0xff]
    %v605 = vld [vmem:[%s455 + $0x68] sm:$0xff]
    %v606 = vld [vmem:[%s455 + $0x70] sm:$0xff]
    %v607 = vld [vmem:[%s455 + $0x78] sm:$0xff]
    %v608 = vsub.f32 %v592, %v504
    %v609 = vsub.f32 %v593, %v504
    %v610 = vsub.f32 %v594, %v505
    %v611 = vsub.f32 %v595, %v505
    %v612 = vsub.f32 %v596, %v506
    %v613 = vsub.f32 %v597, %v506
    %v614 = vsub.f32 %v598, %v507
    %v615 = vsub.f32 %v599, %v507
    %v616 = vsub.f32 %v600, %v508
    %v617 = vsub.f32 %v601, %v508
    %v618 = vsub.f32 %v602, %v509
    %v619 = vsub.f32 %v603, %v509
    %v620 = vsub.f32 %v604, %v510
    %v621 = vsub.f32 %v605, %v510
    %v622 = vsub.f32 %v606, %v511
    %v623 = vsub.f32 %v607, %v511
    %v624 = vmul.f32 %v608, %v608
    %v625 = vmul.f32 %v609, %v609
    %v626 = vmul.f32 %v610, %v610
    %v627 = vmul.f32 %v611, %v611
    %v628 = vmul.f32 %v612, %v612
    %v629 = vmul.f32 %v613, %v613
    %v630 = vmul.f32 %v614, %v614
    %v631 = vmul.f32 %v615, %v615
    %v632 = vmul.f32 %v616, %v616
    %v633 = vmul.f32 %v617, %v617
    %v634 = vmul.f32 %v618, %v618
    %v635 = vmul.f32 %v619, %v619
    %v636 = vmul.f32 %v620, %v620
    %v637 = vmul.f32 %v621, %v621
    %v638 = vmul.f32 %v622, %v622
    %v639 = vmul.f32 %v623, %v623
    %v640 = vadd.f32 %v624, %v625
    %641 = vadd.xlane.f32.xlu0 %v640
    %v642 = vpop.xlane.xlu0 %641
    %v643 = vadd.f32 %v626, %v627
    %644 = vadd.xlane.f32.xlu0 %v643
    %v645 = vpop.xlane.xlu0 %644
    %v646 = vadd.f32 %v628, %v629
    %647 = vadd.xlane.f32.xlu0 %v646
    %v648 = vpop.xlane.xlu0 %647
    %v649 = vadd.f32 %v630, %v631
    %650 = vadd.xlane.f32.xlu0 %v649
    %v651 = vpop.xlane.xlu0 %650
    %v652 = vadd.f32 %v632, %v633
    %653 = vadd.xlane.f32.xlu0 %v652
    %v654 = vpop.xlane.xlu0 %653
    %v655 = vadd.f32 %v634, %v635
    %656 = vadd.xlane.f32.xlu0 %v655
    %v657 = vpop.xlane.xlu0 %656
    %v658 = vadd.f32 %v636, %v637
    %659 = vadd.xlane.f32.xlu0 %v658
    %v660 = vpop.xlane.xlu0 %659
    %v661 = vadd.f32 %v638, %v639
    %662 = vadd.xlane.f32.xlu0 %v661
    %v663 = vpop.xlane.xlu0 %662
    %v664 = vadd.f32 %v584, %v642
    %v665 = vadd.f32 %v585, %v645
    %v666 = vadd.f32 %v586, %v648
    %v667 = vadd.f32 %v587, %v651
    %v668 = vadd.f32 %v588, %v654
    %v669 = vadd.f32 %v589, %v657
    %v670 = vadd.f32 %v590, %v660
    %v671 = vadd.f32 %v591, %v663
    %v672 = vmul.f32 %v664, 0.001953125
    %v673 = vmul.f32 %v665, 0.001953125
    %v674 = vmul.f32 %v666, 0.001953125
    %v675 = vmul.f32 %v667, 0.001953125
    %v676 = vmul.f32 %v668, 0.001953125
    %v677 = vmul.f32 %v669, 0.001953125
    %v678 = vmul.f32 %v670, 0.001953125
    %v679 = vmul.f32 %v671, 0.001953125
    %v680 = vadd.f32 %v672, 1e-05
    %v681 = vadd.f32 %v673, 1e-05
    %v682 = vadd.f32 %v674, 1e-05
    %v683 = vadd.f32 %v675, 1e-05
    %v684 = vadd.f32 %v676, 1e-05
    %v685 = vadd.f32 %v677, 1e-05
    %v686 = vadd.f32 %v678, 1e-05
    %v687 = vadd.f32 %v679, 1e-05
    %v688 = vrsqrt.pop %v680
    %v689 = vrsqrt.pop %v681
    %v690 = vrsqrt.pop %v682
    %v691 = vrsqrt.pop %v683
    %v692 = vrsqrt.pop %v684
    %v693 = vrsqrt.pop %v685
    %v694 = vrsqrt.pop %v686
    %v695 = vrsqrt.pop %v687
    %v696 = vmul.f32 %v688, %v47
    %v697 = vmul.f32 %v689, %v48
    %v698 = vmul.f32 %v690, %v49
    %v699 = vmul.f32 %v691, %v50
    %v700 = vmul.f32 %v692, %v51
    %v701 = vmul.f32 %v693, %v52
    %v702 = vmul.f32 %v694, %v53
    %v703 = vmul.f32 %v695, %v54
    %v704 = vmul.f32 %v504, %v696
    %v705 = vmul.f32 %v505, %v697
    %v706 = vmul.f32 %v506, %v698
    %v707 = vmul.f32 %v507, %v699
    %v708 = vmul.f32 %v508, %v700
    %v709 = vmul.f32 %v509, %v701
    %v710 = vmul.f32 %v510, %v702
    %v711 = vmul.f32 %v511, %v703
    %v712 = vsub.f32 %v55, %v704
    %v713 = vsub.f32 %v56, %v705
    %v714 = vsub.f32 %v57, %v706
    %v715 = vsub.f32 %v58, %v707
    %v716 = vsub.f32 %v59, %v708
    %v717 = vsub.f32 %v60, %v709
    %v718 = vsub.f32 %v61, %v710
    %v719 = vsub.f32 %v62, %v711
    %721 = vset.pattern.permute.xlu0 0
    %722 = vperm.xlu0 %721, %v696
    %v723 = vpop.permute.xlu0 %722
    %726 = vset.pattern.permute.xlu0 0
    %727 = vperm.xlu0 %726, %v697
    %v728 = vpop.permute.xlu0 %727
    %731 = vset.pattern.permute.xlu0 0
    %732 = vperm.xlu0 %731, %v698
    %v733 = vpop.permute.xlu0 %732
    %736 = vset.pattern.permute.xlu0 0
    %737 = vperm.xlu0 %736, %v699
    %v738 = vpop.permute.xlu0 %737
    %741 = vset.pattern.permute.xlu0 0
    %742 = vperm.xlu0 %741, %v700
    %v743 = vpop.permute.xlu0 %742
    %746 = vset.pattern.permute.xlu0 0
    %747 = vperm.xlu0 %746, %v701
    %v748 = vpop.permute.xlu0 %747
    %751 = vset.pattern.permute.xlu0 0
    %752 = vperm.xlu0 %751, %v702
    %v753 = vpop.permute.xlu0 %752
    %756 = vset.pattern.permute.xlu0 0
    %757 = vperm.xlu0 %756, %v703
    %v758 = vpop.permute.xlu0 %757
    %v760 = vmul.f32 %v512, %v723
    %v761 = vmul.f32 %v513, %v723
    %v762 = vmul.f32 %v514, %v728
    %v763 = vmul.f32 %v515, %v728
    %v764 = vmul.f32 %v516, %v733
    %v765 = vmul.f32 %v517, %v733
    %v766 = vmul.f32 %v518, %v738
    %v767 = vmul.f32 %v519, %v738
    %v768 = vmul.f32 %v520, %v743
    %v769 = vmul.f32 %v521, %v743
    %v770 = vmul.f32 %v522, %v748
    %v771 = vmul.f32 %v523, %v748
    %v772 = vmul.f32 %v524, %v753
    %v773 = vmul.f32 %v525, %v753
    %v774 = vmul.f32 %v526, %v758
    %v775 = vmul.f32 %v527, %v758
    %777 = vset.pattern.permute.xlu0 0
    %778 = vperm.xlu0 %777, %v712
    %v779 = vpop.permute.xlu0 %778
    %782 = vset.pattern.permute.xlu0 0
    %783 = vperm.xlu0 %782, %v713
    %v784 = vpop.permute.xlu0 %783
    %787 = vset.pattern.permute.xlu0 0
    %788 = vperm.xlu0 %787, %v714
    %v789 = vpop.permute.xlu0 %788
    %792 = vset.pattern.permute.xlu0 0
    %793 = vperm.xlu0 %792, %v715
    %v794 = vpop.permute.xlu0 %793
    %797 = vset.pattern.permute.xlu0 0
    %798 = vperm.xlu0 %797, %v716
    %v799 = vpop.permute.xlu0 %798
    %802 = vset.pattern.permute.xlu0 0
    %803 = vperm.xlu0 %802, %v717
    %v804 = vpop.permute.xlu0 %803
    %807 = vset.pattern.permute.xlu0 0
    %808 = vperm.xlu0 %807, %v718
    %v809 = vpop.permute.xlu0 %808
    %812 = vset.pattern.permute.xlu0 0
    %813 = vperm.xlu0 %812, %v719
    %v814 = vpop.permute.xlu0 %813
    %v816 = vadd.f32 %v760, %v779
    %v817 = vadd.f32 %v761, %v779
    %v818 = vadd.f32 %v762, %v784
    %v819 = vadd.f32 %v763, %v784
    %v820 = vadd.f32 %v764, %v789
    %v821 = vadd.f32 %v765, %v789
    %v822 = vadd.f32 %v766, %v794
    %v823 = vadd.f32 %v767, %v794
    %v824 = vadd.f32 %v768, %v799
    %v825 = vadd.f32 %v769, %v799
    %v826 = vadd.f32 %v770, %v804
    %v827 = vadd.f32 %v771, %v804
    %v828 = vadd.f32 %v772, %v809
    %v829 = vadd.f32 %v773, %v809
    %v830 = vadd.f32 %v774, %v814
    %v831 = vadd.f32 %v775, %v814
    %v832 = vmax.f32 %v816, 0.0
    %v833 = vmax.f32 %v817, 0.0
    %v834 = vmax.f32 %v818, 0.0
    %v835 = vmax.f32 %v819, 0.0
    %v836 = vmax.f32 %v820, 0.0
    %v837 = vmax.f32 %v821, 0.0
    %v838 = vmax.f32 %v822, 0.0
    %v839 = vmax.f32 %v823, 0.0
    %v840 = vmax.f32 %v824, 0.0
    %v841 = vmax.f32 %v825, 0.0
    %v842 = vmax.f32 %v826, 0.0
    %v843 = vmax.f32 %v827, 0.0
    %v844 = vmax.f32 %v828, 0.0
    %v845 = vmax.f32 %v829, 0.0
    %v846 = vmax.f32 %v830, 0.0
    %v847 = vmax.f32 %v831, 0.0
    %v848 = vpack.c.bf16 %v834, %v832
    %v849 = vpack.c.bf16 %v835, %v833
    %v850 = vpack.c.bf16 %v838, %v836
    %v851 = vpack.c.bf16 %v839, %v837
    %v852 = vpack.c.bf16 %v842, %v840
    %v853 = vpack.c.bf16 %v843, %v841
    %v854 = vpack.c.bf16 %v846, %v844
    %v855 = vpack.c.bf16 %v847, %v845
    %857 = vset.pattern.permute.xlu0 0
    %858 = vperm.xlu0 %857, %v63
    %v859 = vpop.permute.xlu0 %858
    %862 = vset.pattern.permute.xlu0 0
    %863 = vperm.xlu0 %862, %v64
    %v864 = vpop.permute.xlu0 %863
    %vm866 = vcmask 523264
    %v868 = vsel %vm866, %v42, 0
    %870 = vmatprep.subr.bf16.mxu0 %v849
    %871 = vmatpush1.bf16.msra.mxu0 %v848
    %872 = vmatprep.subr.bf16.mxu0 %v851
    %873 = vmatpush1.bf16.msra.mxu0 %v850
    %874 = vmatprep.subr.bf16.mxu0 %v853
    %875 = vmatpush1.bf16.msra.mxu0 %v852
    %876 = vmatprep.subr.bf16.mxu0 %v855
    %877 = vmatpush1.bf16.msra.mxu0 %v854
    %878 = vmatprep.subr.bf16.mxu0 0
    %879 = vmatpush1.bf16.msra.mxu0 0
    %880 = vmatprep.subr.bf16.mxu0 0
    %881 = vmatpush1.bf16.msra.mxu0 0
    %882 = vmatprep.subr.bf16.mxu0 0
    %883 = vmatpush1.bf16.msra.mxu0 0
    %884 = vmatprep.subr.bf16.mxu0 0
    %885 = vmatpush1.bf16.msra.mxu0 0
    %886 = vmatprep.subr.bf16.mxu0 0
    %887 = vmatpush1.bf16.msra.mxu0 0
    %888 = vmatprep.subr.bf16.mxu0 0
    %889 = vmatpush1.bf16.msra.mxu0 0
    %890 = vmatprep.subr.bf16.mxu0 0
    %891 = vmatpush1.bf16.msra.mxu0 0
    %892 = vmatprep.subr.bf16.mxu0 0
    %893 = vmatpush1.bf16.msra.mxu0 0
    %894 = vmatprep.subr.bf16.mxu0 0
    %895 = vmatpush1.bf16.msra.mxu0 0
    %896 = vmatprep.subr.bf16.mxu0 0
    %897 = vmatpush1.bf16.msra.mxu0 0
    %898 = vmatprep.subr.bf16.mxu0 0
    %899 = vmatpush1.bf16.msra.mxu0 0
    %900 = vmatprep.subr.bf16.mxu0 0
    %901 = vmatpush1.bf16.msra.mxu0 0
    %902 = vmatprep.mubr.bf16.mxu0 0
    %903 = vmatmul.mubr.bf16.gmra.mrb[0].mxu0 %v868
    %v904 = vpop.f32.mrb[0].mxu0
    %v905 = vadd.f32 %v859, %v904
    %v906 = vpop.f32.mrb[0].mxu0
    %v907 = vadd.f32 %v859, %v906
    %v908 = vpop.f32.mrb[0].mxu0
    %v909 = vadd.f32 %v864, %v908
    %v910 = vpop.f32.mrb[0].mxu0
    %v911 = vadd.f32 %v864, %v910
    %912 = vdwg.mxu0
    %913 = vst [vmem:[#allocation3] sm:$0xff] %v905
    %914 = vst [vmem:[#allocation3 + $0x8] sm:$0xff] %v907
    %915 = vst [vmem:[#allocation3 + $0x10] sm:$0xff] %v909
    %916 = vst [vmem:[#allocation3 + $0x18] sm:$0xff] %v911
    %v917 = vld [vmem:[%s455] sm:$0xff]
    %v918 = vld [vmem:[%s455 + $0x8] sm:$0xff]
    %v919 = vld [vmem:[%s455 + $0x10] sm:$0xff]
    %v920 = vld [vmem:[%s455 + $0x18] sm:$0xff]
    %v921 = vld [vmem:[%s455 + $0x20] sm:$0xff]
    %v922 = vld [vmem:[%s455 + $0x28] sm:$0xff]
    %v923 = vld [vmem:[%s455 + $0x30] sm:$0xff]
    %v924 = vld [vmem:[%s455 + $0x38] sm:$0xff]
    %v925 = vld [vmem:[%s455 + $0x40] sm:$0xff]
    %v926 = vld [vmem:[%s455 + $0x48] sm:$0xff]
    %v927 = vld [vmem:[%s455 + $0x50] sm:$0xff]
    %v928 = vld [vmem:[%s455 + $0x58] sm:$0xff]
    %v929 = vld [vmem:[%s455 + $0x60] sm:$0xff]
    %v930 = vld [vmem:[%s455 + $0x68] sm:$0xff]
    %v931 = vld [vmem:[%s455 + $0x70] sm:$0xff]
    %v932 = vld [vmem:[%s455 + $0x78] sm:$0xff]
    %v933 = vmul.f32 %v917, %v723
    %v934 = vmul.f32 %v918, %v723
    %v935 = vmul.f32 %v919, %v728
    %v936 = vmul.f32 %v920, %v728
    %v937 = vmul.f32 %v921, %v733
    %v938 = vmul.f32 %v922, %v733
    %v939 = vmul.f32 %v923, %v738
    %v940 = vmul.f32 %v924, %v738
    %v941 = vmul.f32 %v925, %v743
    %v942 = vmul.f32 %v926, %v743
    %v943 = vmul.f32 %v927, %v748
    %v944 = vmul.f32 %v928, %v748
    %v945 = vmul.f32 %v929, %v753
    %v946 = vmul.f32 %v930, %v753
    %v947 = vmul.f32 %v931, %v758
    %v948 = vmul.f32 %v932, %v758
    %v949 = vadd.f32 %v933, %v779
    %v950 = vadd.f32 %v934, %v779
    %v951 = vadd.f32 %v935, %v784
    %v952 = vadd.f32 %v936, %v784
    %v953 = vadd.f32 %v937, %v789
    %v954 = vadd.f32 %v938, %v789
    %v955 = vadd.f32 %v939, %v794
    %v956 = vadd.f32 %v940, %v794
    %v957 = vadd.f32 %v941, %v799
    %v958 = vadd.f32 %v942, %v799
    %v959 = vadd.f32 %v943, %v804
    %v960 = vadd.f32 %v944, %v804
    %v961 = vadd.f32 %v945, %v809
    %v962 = vadd.f32 %v946, %v809
    %v963 = vadd.f32 %v947, %v814
    %v964 = vadd.f32 %v948, %v814
    %v965 = vmax.f32 %v949, 0.0
    %v966 = vmax.f32 %v950, 0.0
    %v967 = vmax.f32 %v951, 0.0
    %v968 = vmax.f32 %v952, 0.0
    %v969 = vmax.f32 %v953, 0.0
    %v970 = vmax.f32 %v954, 0.0
    %v971 = vmax.f32 %v955, 0.0
    %v972 = vmax.f32 %v956, 0.0
    %v973 = vmax.f32 %v957, 0.0
    %v974 = vmax.f32 %v958, 0.0
    %v975 = vmax.f32 %v959, 0.0
    %v976 = vmax.f32 %v960, 0.0
    %v977 = vmax.f32 %v961, 0.0
    %v978 = vmax.f32 %v962, 0.0
    %v979 = vmax.f32 %v963, 0.0
    %v980 = vmax.f32 %v964, 0.0
    %v981 = vpack.c.bf16 %v967, %v965
    %v982 = vpack.c.bf16 %v968, %v966
    %v983 = vpack.c.bf16 %v971, %v969
    %v984 = vpack.c.bf16 %v972, %v970
    %v985 = vpack.c.bf16 %v975, %v973
    %v986 = vpack.c.bf16 %v976, %v974
    %v987 = vpack.c.bf16 %v979, %v977
    %v988 = vpack.c.bf16 %v980, %v978
    %989 = vmatprep.subr.bf16.mxu0 %v982
    %990 = vmatpush1.bf16.msra.mxu0 %v981
    %991 = vmatprep.subr.bf16.mxu0 %v984
    %992 = vmatpush1.bf16.msra.mxu0 %v983
    %993 = vmatprep.subr.bf16.mxu0 %v986
    %994 = vmatpush1.bf16.msra.mxu0 %v985
    %995 = vmatprep.subr.bf16.mxu0 %v988
    %996 = vmatpush1.bf16.msra.mxu0 %v987
    %997 = vmatprep.subr.bf16.mxu0 0
    %998 = vmatpush1.bf16.msra.mxu0 0
    %999 = vmatprep.subr.bf16.mxu0 0
    %1000 = vmatpush1.bf16.msra.mxu0 0
    %1001 = vmatprep.subr.bf16.mxu0 0
    %1002 = vmatpush1.bf16.msra.mxu0 0
    %1003 = vmatprep.subr.bf16.mxu0 0
    %1004 = vmatpush1.bf16.msra.mxu0 0
    %1005 = vmatprep.subr.bf16.mxu0 0
    %1006 = vmatpush1.bf16.msra.mxu0 0
    %1007 = vmatprep.subr.bf16.mxu0 0
    %1008 = vmatpush1.bf16.msra.mxu0 0
    %1009 = vmatprep.subr.bf16.mxu0 0
    %1010 = vmatpush1.bf16.msra.mxu0 0
    %1011 = vmatprep.subr.bf16.mxu0 0
    %1012 = vmatpush1.bf16.msra.mxu0 0
    %1013 = vmatprep.subr.bf16.mxu0 0
    %1014 = vmatpush1.bf16.msra.mxu0 0
    %1015 = vmatprep.subr.bf16.mxu0 0
    %1016 = vmatpush1.bf16.msra.mxu0 0
    %1017 = vmatprep.subr.bf16.mxu0 0
    %1018 = vmatpush1.bf16.msra.mxu0 0
    %1019 = vmatprep.subr.bf16.mxu0 0
    %1020 = vmatpush1.bf16.msra.mxu0 0
    %1021 = vmatprep.mubr.bf16.mxu0 0
    %1022 = vmatmul.mubr.bf16.gmra.mrb[0].mxu0 %v868
    %v1023 = vpop.f32.mrb[0].mxu0
    %v1024 = vadd.f32 %v859, %v1023
    %v1025 = vpop.f32.mrb[0].mxu0
    %v1026 = vadd.f32 %v859, %v1025
    %v1027 = vpop.f32.mrb[0].mxu0
    %v1028 = vadd.f32 %v864, %v1027
    %v1029 = vpop.f32.mrb[0].mxu0
    %v1030 = vadd.f32 %v864, %v1029
    %1031 = vdwg.mxu0
    %s1032 = scalar_lea.vmem [#allocation3], 32
    %1033 = vst [vmem:[%s1032] sm:$0xff] %v1024
    %1034 = vst [vmem:[%s1032 + $0x8] sm:$0xff] %v1026
    %1035 = vst [vmem:[%s1032 + $0x10] sm:$0xff] %v1028
    %1036 = vst [vmem:[%s1032 + $0x18] sm:$0xff] %v1030
    // Predicated region
    $region22: #{tpu_custom_call.1} parent=1 // pred_check
      _
    $region23: #{tpu_custom_call.1} parent=1 // pred_check_branch
      %1038 = sbr.rel (0) target = $region25
    $region24: #{tpu_custom_call.1} parent=1 // pred_region
      %s1040 = ssub.s32 1024, 1024
      %1041 = vsyncadd [#allocation4], %s1040
      %s1042 = sshll.u32 [#allocation3], 4
      %s1043 = int_to_ptr.vmem [resolvable:$true] %s1042
      %1048 = dma.vmem_to_hbm [thread:$0]  %s1043, 1024, %s5, [#allocation4], 256, 256, 16
    $region25: #{tpu_custom_call.1} parent=1 // pred_fallthru
      _
    // Predicated region
    $region26: #{tpu_custom_call.1} parent=1 // pred_check
      _
    $region27: #{tpu_custom_call.1} parent=1 // pred_check_branch
      %1050 = sbr.rel (0) target = $region29
    $region28: #{tpu_custom_call.1} parent=1 // pred_region
      %1051 = dma.done [#allocation4], 1024
    $region29: #{tpu_custom_call.1} parent=1 // pred_fallthru
      _
    %1052 = vsyncpa [#allocation4], 1

</llo_original>
